<compile_context>
chip_gen: v5e
topology: v5e:2x2
jax: 0.10.0
libtpu: 0.0.40
codegen_flags: <defaults>
</compile_context>

<pallas_src>
import math

import jax
import jax.numpy as jnp
from jax.experimental import pallas as pl
from jax.experimental.pallas import tpu as pltpu

IN_DIM = 4          # 1x1o (3) + 1x0e (1)
OUT_DIM = 128       # 42x1o (126) + 2x0e (2)
MUL_1O_OUT = 42
MUL_0E_OUT = 2


def _cdiv(a, b):
    return (a + b - 1) // b


def _round_up(n, m):
    return ((n + m - 1) // m) * m


def _lift_kernel(x_ref, w_ref, o_ref):
    # (tm, 4) x  +  (4, 128) w  ->  (tm, 128) out, all exact f32 on the VPU.
    # Four rank-1 multiply-adds: x column lane-broadcast * w row sublane-broadcast.
    x = x_ref[...]            # (tm, 4)
    w = w_ref[...]            # (4, 128), VMEM-resident
    acc = x[:, 0:1] * w[0:1, :]
    acc = acc + x[:, 1:2] * w[1:2, :]
    acc = acc + x[:, 2:3] * w[2:3, :]
    acc = acc + x[:, 3:4] * w[3:4, :]
    o_ref[...] = acc.astype(o_ref.dtype)


def build_weights(key):
    """Deterministic synthetic weights matching e3nn's parameter shapes."""
    k1, k0 = jax.random.split(key)
    # e3nn initializes each path weight ~ N(0, 1); fan-in normalization = 1 here.
    w_1o = jax.random.normal(k1, (1, MUL_1O_OUT), dtype=jnp.float32)  # 1x1o -> 42x1o
    w_0e = jax.random.normal(k0, (1, MUL_0E_OUT), dtype=jnp.float32)  # 1x0e -> 2x0e

    # Dense (4, 128) equivalent of the irrep-structured linear map.
    w_full = jnp.zeros((IN_DIM, OUT_DIM), dtype=jnp.float32)
    for m in range(3):  # out index u*3 + m  <-  input m-component m
        w_full = w_full.at[m, m : 3 * MUL_1O_OUT : 3].set(w_1o[0, :])
    w_full = w_full.at[3, 3 * MUL_1O_OUT :].set(w_0e[0, :])
    return w_full, w_1o, w_0e


def _choose_tile(M, tm):
    """Row tile: multiple of 8, and >=2 grid steps when M >= 16 (v7x megacore)."""
    if M <= 8:
        return M
    half = _round_up(_cdiv(M, 2), 8)
    tm_eff = min(tm, half)
    return max(8, (tm_eff // 8) * 8)


def e3nn_lifting(x, w_full, *, tm=8192, out_dtype=None):
    """Apply the lifting to channels-last x of shape (..., 4) -> (..., 128)."""
    lead = x.shape[:-1]
    assert x.shape[-1] == IN_DIM
    M = math.prod(lead) if lead else 1
    out_dtype = x.dtype if out_dtype is None else out_dtype
    x2 = x.reshape(M, IN_DIM)

    tm_eff = _choose_tile(M, tm)
    grid = (_cdiv(M, tm_eff),)

    # Double-buffered VMEM footprint.  The (tm, 4) input block lane-pads 4 -> 128
    # in VMEM, so input and output blocks cost the same per row (512 B).
    rows8 = _round_up(tm_eff, 8)
    block_bytes = (rows8 // 8) * 8 * 128 * 4
    vmem_need = 2 * 2 * block_bytes + 2 * 8 * 128 * 4   # x, out double-buffered + w
    vmem_limit = max(32 * 1024 * 1024, int(vmem_need * 1.25))

    cost = pl.CostEstimate(
        flops=2 * M * IN_DIM * OUT_DIM,
        transcendentals=0,
        bytes_accessed=4 * (M * IN_DIM + M * OUT_DIM + IN_DIM * OUT_DIM),
    )

    out = pl.pallas_call(
        _lift_kernel,
        out_shape=jax.ShapeDtypeStruct((M, OUT_DIM), out_dtype),
        grid_spec=pltpu.PrefetchScalarGridSpec(
            num_scalar_prefetch=0,
            grid=grid,
            in_specs=[
                pl.BlockSpec((tm_eff, IN_DIM), lambda i: (i, 0)),
                # Constant index map: the 2 KiB weight stays VMEM-resident.
                pl.BlockSpec((IN_DIM, OUT_DIM), lambda i: (0, 0)),
            ],
            out_specs=pl.BlockSpec((tm_eff, OUT_DIM), lambda i: (i, 0)),
        ),
        compiler_params=pltpu.CompilerParams(
            dimension_semantics=("parallel",),
            vmem_limit_bytes=vmem_limit,
        ),
        cost_estimate=cost,
    )(x2, w_full)

    return out.reshape(*lead, OUT_DIM)


def _reference(x, w_1o, w_0e):
    """Pure-JAX replica of e3nn o3.Linear('1x1o+1x0e' -> '42x1o+2x0e') forward."""
    x1 = x[..., :3]    # (..., 3)   the single 1o input
    x0 = x[..., 3:4]   # (..., 1)   the single 0e input
    # out_1o[..., u, m] = w_1o[0, u] * x1[..., m]
    y1 = (x1[..., None, :] * w_1o[0][:, None]).reshape(*x.shape[:-1], 3 * MUL_1O_OUT)
    y0 = x0 * w_0e[0]  # (..., 2)
    return jnp.concatenate([y1, y0], axis=-1)


if __name__ == "__main__":
    key = jax.random.PRNGKey(0)
    k_w, k_x = jax.random.split(key)

    w_full, w_1o, w_0e = build_weights(k_w)

    # Small example consistent with the module: batch=2, nodes=8, irreps_dim=4.
    x = jax.random.normal(k_x, (2, 8, IN_DIM), dtype=jnp.float32)
    y = jax.block_until_ready(e3nn_lifting(x, w_full))
    y_ref = _reference(x, w_1o, w_0e)
    assert y.shape == (2, 8, OUT_DIM), y.shape
    assert jnp.allclose(y, y_ref, atol=1e-5, rtol=1e-5)

    # Multi-block, misaligned row count: exercises the >=2-step grid and the
    # clipped (ragged) final block with no host-side pad or epilogue slice.
    x2 = jax.random.normal(k_x, (3, 1000, IN_DIM), dtype=jnp.float32)
    y2 = jax.block_until_ready(e3nn_lifting(x2, w_full))
    assert jnp.allclose(y2, _reference(x2, w_1o, w_0e), atol=1e-5, rtol=1e-5)

    # Row count not a multiple of 8: final block clipped inside the kernel.
    x3 = jax.random.normal(k_x, (13, IN_DIM), dtype=jnp.float32)
    y3 = jax.block_until_ready(e3nn_lifting(x3, w_full))
    assert jnp.allclose(y3, _reference(x3, w_1o, w_0e), atol=1e-5, rtol=1e-5)

    print("KERNEL_OK")
</pallas_src>

<mosaic_0001>
module attributes {stable_mosaic.version = 11 : i64} {
  func.func @_lift_kernel(%arg0: i32, %arg1: memref<8x4xf32, #tpu.memory_space<vmem>>, %arg2: memref<4x128xf32, #tpu.memory_space<vmem>>, %arg3: memref<8x128xf32, #tpu.memory_space<vmem>>) attributes {dimension_semantics = [#tpu.dimension_semantics<parallel>], iteration_bounds = array<i64: 2>, scalar_prefetch = 0 : i64, scratch_operands = 0 : i64, tpu.core_type = #tpu.core_type<tc>, window_params = [{transform_indices = @transform_0, window_bounds = array<i64: 8, 4>}, {pipeline_mode = #tpu.pipeline_mode<synchronous>, transform_indices = @transform_1, window_bounds = array<i64: 4, 128>}, {transform_indices = @transform_2, window_bounds = array<i64: 8, 128>}]} {
    %c0 = arith.constant 0 : index
    %c0_0 = arith.constant 0 : index
    %0 = vector.load %arg1[%c0, %c0_0] : memref<8x4xf32, #tpu.memory_space<vmem>>, vector<8x4xf32>
    %c0_1 = arith.constant 0 : index
    %c0_2 = arith.constant 0 : index
    %1 = vector.load %arg2[%c0_1, %c0_2] : memref<4x128xf32, #tpu.memory_space<vmem>>, vector<4x128xf32>
    %2 = vector.extract_strided_slice %0 {offsets = [0, 0], sizes = [8, 1], strides = [1, 1]} : vector<8x4xf32> to vector<8x1xf32>
    %3 = vector.extract_strided_slice %1 {offsets = [0, 0], sizes = [1, 128], strides = [1, 1]} : vector<4x128xf32> to vector<1x128xf32>
    %4 = vector.broadcast %2 : vector<8x1xf32> to vector<8x128xf32>
    %5 = vector.broadcast %3 : vector<1x128xf32> to vector<8x128xf32>
    %6 = arith.mulf %4, %5 : vector<8x128xf32>
    %7 = vector.extract_strided_slice %0 {offsets = [0, 1], sizes = [8, 1], strides = [1, 1]} : vector<8x4xf32> to vector<8x1xf32>
    %8 = vector.extract_strided_slice %1 {offsets = [1, 0], sizes = [1, 128], strides = [1, 1]} : vector<4x128xf32> to vector<1x128xf32>
    %9 = vector.broadcast %7 : vector<8x1xf32> to vector<8x128xf32>
    %10 = vector.broadcast %8 : vector<1x128xf32> to vector<8x128xf32>
    %11 = arith.mulf %9, %10 : vector<8x128xf32>
    %12 = arith.addf %6, %11 : vector<8x128xf32>
    %13 = vector.extract_strided_slice %0 {offsets = [0, 2], sizes = [8, 1], strides = [1, 1]} : vector<8x4xf32> to vector<8x1xf32>
    %14 = vector.extract_strided_slice %1 {offsets = [2, 0], sizes = [1, 128], strides = [1, 1]} : vector<4x128xf32> to vector<1x128xf32>
    %15 = vector.broadcast %13 : vector<8x1xf32> to vector<8x128xf32>
    %16 = vector.broadcast %14 : vector<1x128xf32> to vector<8x128xf32>
    %17 = arith.mulf %15, %16 : vector<8x128xf32>
    %18 = arith.addf %12, %17 : vector<8x128xf32>
    %19 = vector.extract_strided_slice %0 {offsets = [0, 3], sizes = [8, 1], strides = [1, 1]} : vector<8x4xf32> to vector<8x1xf32>
    %20 = vector.extract_strided_slice %1 {offsets = [3, 0], sizes = [1, 128], strides = [1, 1]} : vector<4x128xf32> to vector<1x128xf32>
    %21 = vector.broadcast %19 : vector<8x1xf32> to vector<8x128xf32>
    %22 = vector.broadcast %20 : vector<1x128xf32> to vector<8x128xf32>
    %23 = arith.mulf %21, %22 : vector<8x128xf32>
    %24 = arith.addf %18, %23 : vector<8x128xf32>
    %c0_3 = arith.constant 0 : index
    %c0_4 = arith.constant 0 : index
    %25 = vector.load %arg3[%c0_3, %c0_4] : memref<8x128xf32, #tpu.memory_space<vmem>>, vector<8x128xf32>
    tpu.vector_store %arg3[%c0_3, %c0_4], %24 {strides = array<i32>} : memref<8x128xf32, #tpu.memory_space<vmem>>, vector<8x128xf32>,
    return
  }
  func.func @transform_0(%arg0: i32) -> (i32, i32) {
    %c0_i32 = arith.constant 0 : i32
    %c0_i32_0 = arith.constant 0 : i32
    return %arg0, %c0_i32 : i32, i32
  }
  func.func @transform_1(%arg0: i32) -> (i32, i32) {
    %c0_i32 = arith.constant 0 : i32
    %c0_i32_0 = arith.constant 0 : i32
    %c0_i32_1 = arith.constant 0 : i32
    return %c0_i32, %c0_i32_0 : i32, i32
  }
  func.func @transform_2(%arg0: i32) -> (i32, i32) {
    %c0_i32 = arith.constant 0 : i32
    %c0_i32_0 = arith.constant 0 : i32
    return %arg0, %c0_i32 : i32, i32
  }
}

</mosaic_0001>

<llo_original>
// kernel: tpu_custom_call.1
$region0: #{tpu_custom_call.1}
  #allocation0 [shape = 'u32[]', space=smem, size = 0x4, offset = 0x4, fixed_abs, tag = 'smem constant byte address 0x4 - core index']
  #allocation1 [shape = 'u32[72,128]{1,0:T(1,128)}', space=vmem, size = 0x9000, scoped, tag = 'internal scratch']
  %s0 = inlined_call_operand.vmem [shape: f32[16,4], index: 0, kind: input, shape index: {}]
  %s1 = inlined_call_operand.vmem [shape: f32[4,128], index: 1, kind: input, shape index: {}]
  %s2 = inlined_call_operand.hbm [shape: f32[16,128], index: 2, kind: output, shape index: {}]
  %s3 = sld [smem:[#allocation0]]
  $region41: #{tpu_custom_call.1} parent=0
    _
  %s5 = ssub.s32 1, %s3
  %s6 = scalar_select 0, %s5, %s3
  $region1: #{tpu_custom_call.1} parent=0
    #allocation2 [shape = 'u8[8192]{0}', space=vmem, size = 0x2000, scoped, tag = 'output window, operand 0']
    #allocation3 [shape = 's32[2]{0}', space=sflag, size = 0x8, scoped, tag = 'scoped memory for tpu_custom_call.1']
    %7 = vsyncpa [#allocation3], 0
    %s8 = scalar_lea.sflag [#allocation3], 1
    %9 = vsyncpa %s8, 0
    loop: start=0, step=1, limit=4
    $region2: #{tpu_custom_call.1} parent=1 // loop_pre_header
      _
    $region3: #{tpu_custom_call.1} parent=1 // loop_header
      %s11 = sphi 0, %s15
      %p12 = scmp.ge.s32.totalorder %s11, 4
      %s21 = sphi 0, %s23
      %s24 = sphi 0, %s21
      %s25 = sphi 0, %s24
      %s41 = sphi 0, %s25
      %s45 = sphi 0, %s45
      %s47 = sphi 0, %s45
      %s48 = sphi 0, %s47
      %s62 = sphi 0, %s48
      %s68 = sphi 0, %s70
      %s71 = sphi 0, %s68
      %s72 = sphi 0, %s71
      %s88 = sphi 0, %s72
    $region4: #{tpu_custom_call.1} parent=1 // loop_header_branch
      %14 = sbr.rel (%p12) target = $region8
    $region5: #{tpu_custom_call.1} parent=1 // loop_body
      %s16 = ssub.s32 %s11, 1
      %s17 = ssub.s32 %s11, 2
      %s18 = sadd.s32 %s11, 1
      %s19 = ssub.s32 %s11, %s18
      %p20 = scmp.eq.s32.totalorder %s19, 0
      %s22 = sadd.s32 %s21, 1
      %s23 = scalar_select %p20, %s21, %s22
      %p26 = pneg %p20
      %p27 = scmp.eq.s32.totalorder %s11, 1
      %p28 = por %p26, %p27
      %p29 = scmp.ne.s32.totalorder %s21, %s24
      %p30 = scmp.eq.s32.totalorder %s11, 0
      %p31 = por %p29, %p30
      %p32 = scmp.ne.s32.totalorder %s21, %s24
      %p33 = scmp.eq.s32.totalorder %s16, 1
      %p34 = por %p32, %p33
      %p35 = scmp.ne.s32.totalorder %s24, %s25
      %p36 = scmp.eq.s32.totalorder %s16, 0
      %p37 = por %p35, %p36
      %p38 = scmp.ne.s32.totalorder %s24, %s25
      %p39 = scmp.eq.s32.totalorder %s17, 1
      %p40 = por %p38, %p39
      %p42 = scmp.ne.s32.totalorder %s25, %s41
      %p43 = scmp.eq.s32.totalorder %s17, 0
      %p44 = por %p42, %p43
      %s46 = sadd.s32 %s45, 1
      %p49 = scmp.eq.s32.totalorder %s11, 1
      %p50 = scmp.ne.s32.totalorder %s45, %s47
      %p51 = scmp.eq.s32.totalorder %s11, 0
      %p52 = por %p50, %p51
      %p53 = scmp.ne.s32.totalorder %s45, %s47
      %p54 = scmp.eq.s32.totalorder %s16, 1
      %p55 = por %p53, %p54
      %p56 = scmp.ne.s32.totalorder %s47, %s48
      %p57 = scmp.eq.s32.totalorder %s16, 0
      %p58 = por %p56, %p57
      %p59 = scmp.ne.s32.totalorder %s47, %s48
      %p60 = scmp.eq.s32.totalorder %s17, 1
      %p61 = por %p59, %p60
      %p63 = scmp.ne.s32.totalorder %s48, %s62
      %p64 = scmp.eq.s32.totalorder %s17, 0
      %p65 = por %p63, %p64
      %s66 = ssub.s32 %s11, %s18
      %p67 = scmp.eq.s32.totalorder %s66, 0
      %s69 = sadd.s32 %s68, 1
      %s70 = scalar_select %p67, %s68, %s69
      %p73 = pneg %p67
      %p74 = scmp.eq.s32.totalorder %s11, 1
      %p75 = por %p73, %p74
      %p76 = scmp.ne.s32.totalorder %s68, %s71
      %p77 = scmp.eq.s32.totalorder %s11, 0
      %p78 = por %p76, %p77
      %p79 = scmp.ne.s32.totalorder %s68, %s71
      %p80 = scmp.eq.s32.totalorder %s16, 1
      %p81 = por %p79, %p80
      %p82 = scmp.ne.s32.totalorder %s71, %s72
      %p83 = scmp.eq.s32.totalorder %s16, 0
      %p84 = por %p82, %p83
      %p85 = scmp.ne.s32.totalorder %s71, %s72
      %p86 = scmp.eq.s32.totalorder %s17, 1
      %p87 = por %p85, %p86
      %p89 = scmp.ne.s32.totalorder %s72, %s88
      %p90 = scmp.eq.s32.totalorder %s17, 0
      %p91 = por %p89, %p90
      %p92 = scmp.le.s32.totalorder 1, %s11
      %p93 = scmp.lt.s32.totalorder %s11, 3
      %p94 = pnand %p92, %p93
      %p95 = pneg %p94
      // Predicated region
      $region9: #{tpu_custom_call.1} parent=5 // pred_check
        _
      $region10: #{tpu_custom_call.1} parent=5 // pred_check_branch
        %97 = sbr.rel (%p94) target = $region12
      $region11: #{tpu_custom_call.1} parent=5 // pred_region
        %s98 = ssub.s32 %s11, 1
        // Predicated region
        $region13: #{tpu_custom_call.1} parent=11 // pred_check
          %p99 = pneg %p58
        $region14: #{tpu_custom_call.1} parent=11 // pred_check_branch
          %101 = sbr.rel (%p99) target = $region16
        $region15: #{tpu_custom_call.1} parent=11 // pred_region
          _
        $region16: #{tpu_custom_call.1} parent=11 // pred_fallthru
          _
      $region12: #{tpu_custom_call.1} parent=5 // pred_fallthru
        _
      %p102 = scmp.lt.s32.totalorder %s11, 2
      // Predicated region
      $region17: #{tpu_custom_call.1} parent=5 // pred_check
        %p103 = pneg %p102
      $region18: #{tpu_custom_call.1} parent=5 // pred_check_branch
        %105 = sbr.rel (%p103) target = $region20
      $region19: #{tpu_custom_call.1} parent=5 // pred_region
        // Predicated region
        $region21: #{tpu_custom_call.1} parent=19 // pred_check
          %p106 = pneg %p31
        $region22: #{tpu_custom_call.1} parent=19 // pred_check_branch
          %108 = sbr.rel (%p106) target = $region24
        $region23: #{tpu_custom_call.1} parent=19 // pred_region
          %p109 = scmp.lt.s32.totalorder %s11, 1
          %s110 = scalar_select %p109, %s11, 1
          %s111 = smul.addr %s110, 8
          %s112 = scalar_lea.vmem %s0, %s111
        $region24: #{tpu_custom_call.1} parent=19 // pred_fallthru
          _
      $region20: #{tpu_custom_call.1} parent=5 // pred_fallthru
        _
      %p113 = scmp.le.s32.totalorder 1, %s11
      %p114 = scmp.lt.s32.totalorder %s11, 3
      %p115 = pnand %p113, %p114
      %p116 = pneg %p115
      // Predicated region
      $region25: #{tpu_custom_call.1} parent=5 // pred_check
        _
      $region26: #{tpu_custom_call.1} parent=5 // pred_check_branch
        %118 = sbr.rel (%p115) target = $region28
      $region27: #{tpu_custom_call.1} parent=5 // pred_region
        %s119 = ssub.s32 %s11, 1
        %p120 = scmp.lt.s32.totalorder %s16, 1
        %s121 = scalar_select %p120, %s16, 1
        %s122 = smul.addr %s121, 8
        %s123 = scalar_lea.vmem %s0, %s122
        %p124 = pneg %p37
        %p125 = pneg %p34
        %p126 = pneg %p58
        %p127 = pneg %p55
        %p128 = pneg %p84
        %p129 = pneg %p81
        %s130 = sand.u32 %s71, 1
        %s131 = scalar_lea.sflag [#allocation3], %s130
        %s132 = sand.u32 %s71, 1
        %s133 = smul.addr %s132, 8
        %s134 = scalar_lea.vmem [#allocation2], %s133
        %p135 = scmp.lt.s32.totalorder %s16, 1
        %s136 = scalar_select %p135, %s16, 1
        %s137 = smul.addr %s136, 8
        %s138 = scalar_lea.vmem %s0, %s137
        %v139 = vld [vmem:[%s138] sm:$0xff]
        %v140 = vld [vmem:[%s1] sm:$0xf]
        %142 = vset.pattern.permute.xlu0 0
        %143 = vperm.xlu0 %142, %v139
        %v144 = vpop.permute.xlu0 %143
        %v146 = vperm.slane %v140, 0
        %v147 = vmul.f32 %v144, %v146
        %148 = vset.pattern.permute.xlu0 1
        %149 = vperm.xlu0 %148, %v139
        %v150 = vpop.permute.xlu0 %149
        %v152 = vperm.slane %v140, 1
        %v153 = vmul.f32 %v150, %v152
        %v154 = vadd.f32 %v147, %v153
        %155 = vset.pattern.permute.xlu0 2
        %156 = vperm.xlu0 %155, %v139
        %v157 = vpop.permute.xlu0 %156
        %v159 = vperm.slane %v140, 2
        %v160 = vmul.f32 %v157, %v159
        %v161 = vadd.f32 %v154, %v160
        %162 = vset.pattern.permute.xlu0 3
        %163 = vperm.xlu0 %162, %v139
        %v164 = vpop.permute.xlu0 %163
        %v166 = vperm.slane %v140, 3
        %v167 = vmul.f32 %v164, %v166
        %v168 = vadd.f32 %v161, %v167
        %169 = vst [vmem:[%s134] sm:$0xff] %v168
        %s170 = sand.u32 %s71, 1
        %s171 = scalar_lea.sflag [#allocation3], %s170
        %s172 = sand.u32 %s71, 1
        %s173 = smul.addr %s172, 8
        %s174 = scalar_lea.vmem [#allocation2], %s173
        // Predicated region
        $region29: #{tpu_custom_call.1} parent=27 // pred_check
          %p175 = pneg %p81
        $region30: #{tpu_custom_call.1} parent=27 // pred_check_branch
          %177 = sbr.rel (%p175) target = $region32
        $region31: #{tpu_custom_call.1} parent=27 // pred_region
          %179 = vsyncadd %s171, 0
          %s180 = smul.addr %s16, 8
          %s181 = scalar_lea.hbm %s2, %s180
          %s183 = sshll.u32 %s174, 4
          %s184 = int_to_ptr.vmem [resolvable:$true] %s183
          %s185 = sshll.u32 %s181, 4
          %s186 = int_to_ptr.hbm [resolvable:$true] %s185
          %188 = dma.vmem_to_hbm [thread:$0]  %s184, 128, %s186, %s171
        $region32: #{tpu_custom_call.1} parent=27 // pred_fallthru
          _
      $region28: #{tpu_custom_call.1} parent=5 // pred_fallthru
        _
      %p189 = scmp.le.s32.totalorder 2, %s11
      // Predicated region
      $region33: #{tpu_custom_call.1} parent=5 // pred_check
        %p190 = pneg %p189
      $region34: #{tpu_custom_call.1} parent=5 // pred_check_branch
        %192 = sbr.rel (%p190) target = $region36
      $region35: #{tpu_custom_call.1} parent=5 // pred_region
        %s193 = ssub.s32 %s11, 2
        // Predicated region
        $region37: #{tpu_custom_call.1} parent=35 // pred_check
          %p194 = pneg %p87
        $region38: #{tpu_custom_call.1} parent=35 // pred_check_branch
          %196 = sbr.rel (%p194) target = $region40
        $region39: #{tpu_custom_call.1} parent=35 // pred_region
          %s197 = sand.u32 %s72, 1
          %s198 = scalar_lea.sflag [#allocation3], %s197
          %s199 = sand.u32 %s72, 1
          %s200 = smul.addr %s199, 8
          %s201 = scalar_lea.vmem [#allocation2], %s200
          %203 = dma.done %s198, 128
        $region40: #{tpu_custom_call.1} parent=35 // pred_fallthru
          _
      $region36: #{tpu_custom_call.1} parent=5 // pred_fallthru
        _
    $region6: #{tpu_custom_call.1} parent=1 // loop_footer
      %s15 = sadd.s32 1, %s11
    $region7: #{tpu_custom_call.1} parent=1 // loop_footer_branch
      %10 = sbr.rel target = $region3
    $region8: #{tpu_custom_call.1} parent=1 // loop_exit
      _
    %204 = vsyncpa [#allocation3], 1
    %s205 = scalar_lea.sflag [#allocation3], 1
    %206 = vsyncpa %s205, 1

</llo_original>
